<compile_context>
chip_gen: v5e
topology: v5e:2x2
jax: 0.10.0
libtpu: 0.0.40
codegen_flags: <defaults>
</compile_context>

<pallas_src>
import functools
import math

import jax
import jax.numpy as jnp
from jax.experimental import pallas as pl
from jax.experimental.pallas import tpu as pltpu


def _round_up(n, m):
    return ((n + m - 1) // m) * m


def _combnet_kernel(tau_ref, x_ref, w_ref, b_ref, o_ref, *, K):
    # Single fused MXU matmul for both heads (f32 accumulation).
    logits = jnp.dot(x_ref[...], w_ref[...], preferred_element_type=jnp.float32)
    logits = logits + b_ref[...]                              # [bb, 2K] f32

    # Segmented softmax over the two K-wide lane segments (no concat/copies).
    lane = jax.lax.broadcasted_iota(jnp.int32, logits.shape, 1)
    is_orig = lane < K                                        # [bb, 2K]
    neg_inf = jnp.float32(-jnp.inf)

    m1 = jnp.max(jnp.where(is_orig, logits, neg_inf), axis=-1, keepdims=True)
    m2 = jnp.max(jnp.where(is_orig, neg_inf, logits), axis=-1, keepdims=True)
    e = jnp.exp(logits - jnp.where(is_orig, m1, m2))          # one exp pass
    s1 = jnp.sum(jnp.where(is_orig, e, 0.0), axis=-1, keepdims=True)
    s2 = jnp.sum(jnp.where(is_orig, 0.0, e), axis=-1, keepdims=True)

    # Exact reciprocals keep the 1e-5 tolerance; approx=True is a valid
    # EUP-slot micro-opt if the tolerance is relaxed.
    r1 = pl.reciprocal(s1, approx=False)                      # [bb, 1]
    r2 = pl.reciprocal(s2, approx=False)

    # max(softmax(net_orig(x))) == exp(m1 - m1) * (1/s1) == r1 exactly.
    cond = r1 > tau_ref[0]                                    # [bb, 1] bool

    p = e * jnp.where(is_orig, r1, r2)                        # [bb, 2K] probs
    o_ref[...] = jnp.where(cond, p[:, :K], p[:, K:]).astype(o_ref.dtype)


def combnet_logit(x_nchw, w1, b1, w2, b2, tau=0.5, *, block_b=2048):
    """x_nchw: [B,C,H,W]; w*: [D,K] (D=C*H*W); b*: [K]. Returns [B,K] f32."""
    B = x_nchw.shape[0]
    D = math.prod(x_nchw.shape[1:])
    K = w1.shape[1]

    # Same element order as torch's .view(B, -1).  Keep x's HBM dtype: no
    # standalone cast in the wrapper (bf16 path only when x is already bf16).
    x2d = x_nchw.reshape(B, D)
    in_dtype = x2d.dtype
    itemsize = jnp.dtype(in_dtype).itemsize

    w_fused = jnp.concatenate([w1, w2], axis=1).astype(in_dtype)       # [D, 2K]
    b_fused = jnp.concatenate([b1, b2]).reshape(1, 2 * K).astype(jnp.float32)
    tau_arr = jnp.full((1,), tau, dtype=jnp.float32)

    # Batch tile: as large as possible (HBM-bound -> amortize the ~0.35us
    # per-step overhead), but capped so the grid has >= 2 steps when B allows
    # (lets v7x's two TensorCores split the "parallel" batch axis).
    bb = min(block_b, _round_up(pl.cdiv(B, 2), 8), _round_up(B, 8))
    bb = max(bb, 8)
    # Keep the double-buffered x tiles under ~24 MiB of VMEM (v7x-safe).
    while bb > 8 and 2 * bb * D * itemsize > (24 << 20):
        bb = max(8, _round_up(bb // 2, 8))
    grid = (pl.cdiv(B, bb),)

    # Scoped-VMEM budget: double-buffered x/out tiles + resident weights
    # + headroom.  Floor 32 MiB lifts v5e above its 16 MiB default for large
    # tiles; ceiling 48 MiB stays inside v7x's 64 MiB physical VMEM.
    w_bytes = D * 2 * K * itemsize + 2 * K * 4
    need = 2 * (bb * D * itemsize + bb * K * 4) + 2 * w_bytes + (4 << 20)
    vmem_limit = int(min(max(need, 32 << 20), 48 << 20))

    kernel = functools.partial(_combnet_kernel, K=K)

    return pl.pallas_call(
        kernel,
        out_shape=jax.ShapeDtypeStruct((B, K), jnp.float32),
        grid=grid,
        in_specs=[
            pl.BlockSpec(memory_space=pltpu.MemorySpace.SMEM),   # tau scalar
            pl.BlockSpec((bb, D), lambda i: (i, 0)),             # x batch tile
            pl.BlockSpec((D, 2 * K), lambda i: (0, 0)),          # fused weights, resident
            pl.BlockSpec((1, 2 * K), lambda i: (0, 0)),          # fused bias, resident
        ],
        out_specs=pl.BlockSpec((bb, K), lambda i: (i, 0)),
        compiler_params=pltpu.CompilerParams(
            dimension_semantics=("parallel",),
            vmem_limit_bytes=vmem_limit,
        ),
        cost_estimate=pl.CostEstimate(
            flops=2 * B * D * 2 * K,
            transcendentals=B * 2 * K,
            bytes_accessed=B * D * itemsize + B * K * 4 + w_bytes,
        ),
    )(tau_arr, x2d, w_fused, b_fused)


def _reference(x_nchw, w1, b1, w2, b2, tau=0.5):
    B = x_nchw.shape[0]
    x2d = x_nchw.reshape(B, -1).astype(jnp.float32)
    x1 = jax.nn.softmax(x2d @ w1 + b1, axis=1)
    x2 = jax.nn.softmax(x2d @ w2 + b2, axis=1)
    cond = (jnp.max(x1, axis=1) > tau)[:, None]
    return x1 * cond + x2 * (~cond)


if __name__ == "__main__":
    key = jax.random.PRNGKey(0)
    B, C, H, W, K = 2, 4, 16, 16, 10          # D = C*H*W = 1024
    D = C * H * W
    k_x, k_w1, k_b1, k_w2, k_b2, k_x2 = jax.random.split(key, 6)

    x = jax.random.normal(k_x, (B, C, H, W), dtype=jnp.float32)
    w1 = 0.05 * jax.random.normal(k_w1, (D, K), dtype=jnp.float32)
    b1 = 0.05 * jax.random.normal(k_b1, (K,), dtype=jnp.float32)
    w2 = 0.05 * jax.random.normal(k_w2, (D, K), dtype=jnp.float32)
    b2 = 0.05 * jax.random.normal(k_b2, (K,), dtype=jnp.float32)

    # f32 path, single (padded) tile.
    out_f32 = jax.block_until_ready(combnet_logit(x, w1, b1, w2, b2, tau=0.5))
    ref_f32 = _reference(x, w1, b1, w2, b2, tau=0.5)
    assert out_f32.shape == (B, K)
    assert jnp.allclose(out_f32, ref_f32, atol=1e-5, rtol=1e-5), "f32 mismatch vs reference"

    # Multi-tile path: grid > 1 with a partial last tile (B2 not multiple of bb).
    B2 = 20
    x_big = jax.random.normal(k_x2, (B2, C, H, W), dtype=jnp.float32)
    out_big = jax.block_until_ready(combnet_logit(x_big, w1, b1, w2, b2, tau=0.5))
    ref_big = _reference(x_big, w1, b1, w2, b2, tau=0.5)
    assert out_big.shape == (B2, K)
    assert jnp.allclose(out_big, ref_big, atol=1e-5, rtol=1e-5), "multi-tile f32 mismatch"

    # bf16-in-HBM fast path: x already bf16 upstream (no wrapper cast), f32 accumulate.
    x_bf16 = x_big.astype(jnp.bfloat16)
    out_bf16 = jax.block_until_ready(combnet_logit(x_bf16, w1, b1, w2, b2, tau=0.5))
    ref_bf16 = _reference(
        x_bf16.astype(jnp.float32),
        w1.astype(jnp.bfloat16).astype(jnp.float32), b1,
        w2.astype(jnp.bfloat16).astype(jnp.float32), b2, tau=0.5)
    assert out_bf16.shape == (B2, K)
    assert jnp.allclose(out_bf16, ref_bf16, atol=2e-3, rtol=2e-3), "bf16 mismatch vs reference"

    print("KERNEL_OK")
</pallas_src>

<mosaic_0001>
module attributes {stable_mosaic.version = 11 : i64} {
  func.func @_combnet_kernel(%arg0: i32, %arg1: memref<1xf32, #tpu.memory_space<smem>>, %arg2: memref<8x1024xf32, #tpu.memory_space<vmem>>, %arg3: memref<1024x20xf32, #tpu.memory_space<vmem>>, %arg4: memref<1x20xf32, #tpu.memory_space<vmem>>, %arg5: memref<8x10xf32, #tpu.memory_space<vmem>>) attributes {dimension_semantics = [#tpu.dimension_semantics<parallel>], iteration_bounds = array<i64: 1>, scalar_prefetch = 0 : i64, scratch_operands = 0 : i64, tpu.core_type = #tpu.core_type<tc>, window_params = [{transform_indices = @transform_0, window_bounds = array<i64: 1>}, {transform_indices = @transform_1, window_bounds = array<i64: 8, 1024>}, {pipeline_mode = #tpu.pipeline_mode<synchronous>, transform_indices = @transform_2, window_bounds = array<i64: 1024, 20>}, {pipeline_mode = #tpu.pipeline_mode<synchronous>, transform_indices = @transform_3, window_bounds = array<i64: 1, 20>}, {transform_indices = @transform_4, window_bounds = array<i64: 8, 10>}]} {
    %c0 = arith.constant 0 : index
    %c0_0 = arith.constant 0 : index
    %0 = vector.load %arg2[%c0, %c0_0] : memref<8x1024xf32, #tpu.memory_space<vmem>>, vector<8x1024xf32>
    %c0_1 = arith.constant 0 : index
    %c0_2 = arith.constant 0 : index
    %1 = vector.load %arg3[%c0_1, %c0_2] : memref<1024x20xf32, #tpu.memory_space<vmem>>, vector<1024x20xf32>
    %cst = arith.constant dense<0.000000e+00> : vector<8x20xf32>
    %2 = tpu.matmul %0, %1, %cst {dimension_numbers = #tpu.dot_dimension_numbers<[1], [0], [0], [1], [0, 0, 1, 1], [], []>} : vector<8x1024xf32>, vector<1024x20xf32>, vector<8x20xf32> -> vector<8x20xf32>
    %c0_3 = arith.constant 0 : index
    %c0_4 = arith.constant 0 : index
    %3 = vector.load %arg4[%c0_3, %c0_4] : memref<1x20xf32, #tpu.memory_space<vmem>>, vector<1x20xf32>
    %4 = vector.broadcast %3 : vector<1x20xf32> to vector<8x20xf32>
    %5 = arith.addf %2, %4 : vector<8x20xf32>
    %6 = tpu.iota {dimensions = array<i32: 1>} : vector<8x20xi32>
    %c10_i32 = arith.constant 10 : i32
    %7 = vector.broadcast %c10_i32 : i32 to vector<8x20xi32>
    %8 = arith.cmpi slt, %6, %7 : vector<8x20xi32>
    %cst_5 = arith.constant 0xFF800000 : f32
    %9 = vector.broadcast %cst_5 : f32 to vector<8x20xf32>
    %10 = arith.select %8, %5, %9 : vector<8x20xi1>, vector<8x20xf32>
    %cst_6 = arith.constant dense<0xFF800000> : vector<8xf32>
    %11 = vector.multi_reduction <maximumf>, %10, %cst_6 [1] : vector<8x20xf32> to vector<8xf32>
    %12 = vector.shape_cast %11 : vector<8xf32> to vector<8x1xf32>
    %cst_7 = arith.constant 0xFF800000 : f32
    %13 = vector.broadcast %cst_7 : f32 to vector<8x20xf32>
    %14 = arith.select %8, %13, %5 : vector<8x20xi1>, vector<8x20xf32>
    %cst_8 = arith.constant dense<0xFF800000> : vector<8xf32>
    %15 = vector.multi_reduction <maximumf>, %14, %cst_8 [1] : vector<8x20xf32> to vector<8xf32>
    %16 = vector.shape_cast %15 : vector<8xf32> to vector<8x1xf32>
    %17 = vector.shape_cast %12 : vector<8x1xf32> to vector<8x1xf32>
    %18 = vector.broadcast %17 : vector<8x1xf32> to vector<8x20xf32>
    %19 = vector.shape_cast %16 : vector<8x1xf32> to vector<8x1xf32>
    %20 = vector.broadcast %19 : vector<8x1xf32> to vector<8x20xf32>
    %21 = arith.select %8, %18, %20 : vector<8x20xi1>, vector<8x20xf32>
    %22 = arith.subf %5, %21 : vector<8x20xf32>
    %23 = math.exp %22 : vector<8x20xf32>
    %cst_9 = arith.constant 0.000000e+00 : f32
    %24 = vector.broadcast %cst_9 : f32 to vector<8x20xf32>
    %25 = arith.select %8, %23, %24 : vector<8x20xi1>, vector<8x20xf32>
    %cst_10 = arith.constant dense<0.000000e+00> : vector<8xf32>
    %26 = vector.multi_reduction <add>, %25, %cst_10 [1] : vector<8x20xf32> to vector<8xf32>
    %27 = vector.shape_cast %26 : vector<8xf32> to vector<8x1xf32>
    %cst_11 = arith.constant 0.000000e+00 : f32
    %28 = vector.broadcast %cst_11 : f32 to vector<8x20xf32>
    %29 = arith.select %8, %28, %23 : vector<8x20xi1>, vector<8x20xf32>
    %cst_12 = arith.constant dense<0.000000e+00> : vector<8xf32>
    %30 = vector.multi_reduction <add>, %29, %cst_12 [1] : vector<8x20xf32> to vector<8xf32>
    %31 = vector.shape_cast %30 : vector<8xf32> to vector<8x1xf32>
    %32 = tpu.reciprocal %27 : vector<8x1xf32> -> vector<8x1xf32>
    %33 = tpu.reciprocal %31 : vector<8x1xf32> -> vector<8x1xf32>
    %c0_13 = arith.constant 0 : index
    %34 = memref.load %arg1[%c0_13] : memref<1xf32, #tpu.memory_space<smem>>
    %35 = vector.broadcast %34 : f32 to vector<8x1xf32>
    %36 = arith.cmpf ogt, %32, %35 : vector<8x1xf32>
    %37 = vector.shape_cast %32 : vector<8x1xf32> to vector<8x1xf32>
    %38 = vector.broadcast %37 : vector<8x1xf32> to vector<8x20xf32>
    %39 = vector.shape_cast %33 : vector<8x1xf32> to vector<8x1xf32>
    %40 = vector.broadcast %39 : vector<8x1xf32> to vector<8x20xf32>
    %41 = arith.select %8, %38, %40 : vector<8x20xi1>, vector<8x20xf32>
    %42 = arith.mulf %23, %41 : vector<8x20xf32>
    %43 = vector.extract_strided_slice %42 {offsets = [0, 0], sizes = [8, 10], strides = [1, 1]} : vector<8x20xf32> to vector<8x10xf32>
    %44 = vector.extract_strided_slice %42 {offsets = [0, 10], sizes = [8, 10], strides = [1, 1]} : vector<8x20xf32> to vector<8x10xf32>
    %45 = vector.shape_cast %36 : vector<8x1xi1> to vector<8x1xi1>
    %46 = vector.broadcast %45 : vector<8x1xi1> to vector<8x10xi1>
    %47 = arith.select %46, %43, %44 : vector<8x10xi1>, vector<8x10xf32>
    %c0_14 = arith.constant 0 : index
    %c0_15 = arith.constant 0 : index
    %48 = vector.load %arg5[%c0_14, %c0_15] : memref<8x10xf32, #tpu.memory_space<vmem>>, vector<8x10xf32>
    tpu.vector_store %arg5[%c0_14, %c0_15], %47 {strides = array<i32>} : memref<8x10xf32, #tpu.memory_space<vmem>>, vector<8x10xf32>,
    return
  }
  func.func @transform_0(%arg0: i32) -> i32 {
    %c0_i32 = arith.constant 0 : i32
    %c0_i32_0 = arith.constant 0 : i32
    return %c0_i32 : i32
  }
  func.func @transform_1(%arg0: i32) -> (i32, i32) {
    %c0_i32 = arith.constant 0 : i32
    %c0_i32_0 = arith.constant 0 : i32
    return %arg0, %c0_i32 : i32, i32
  }
  func.func @transform_2(%arg0: i32) -> (i32, i32) {
    %c0_i32 = arith.constant 0 : i32
    %c0_i32_0 = arith.constant 0 : i32
    %c0_i32_1 = arith.constant 0 : i32
    return %c0_i32, %c0_i32_0 : i32, i32
  }
  func.func @transform_3(%arg0: i32) -> (i32, i32) {
    %c0_i32 = arith.constant 0 : i32
    %c0_i32_0 = arith.constant 0 : i32
    %c0_i32_1 = arith.constant 0 : i32
    return %c0_i32, %c0_i32_0 : i32, i32
  }
  func.func @transform_4(%arg0: i32) -> (i32, i32) {
    %c0_i32 = arith.constant 0 : i32
    %c0_i32_0 = arith.constant 0 : i32
    return %arg0, %c0_i32 : i32, i32
  }
}

</mosaic_0001>

<llo_original>
// kernel: tpu_custom_call.1
$region0: #{tpu_custom_call.1}
  #allocation0 [shape = 'u32[]', space=smem, size = 0x4, offset = 0x4, fixed_abs, tag = 'smem constant byte address 0x4 - core index']
  #allocation1 [shape = 'u32[72,128]{1,0:T(1,128)}', space=vmem, size = 0x9000, scoped, tag = 'internal scratch']
  #allocation2 [shape = 'f32[1]{0:T(128)S(6)}', space=smem, size = 0x200, scoped, tag = 'scoped memory for tpu_custom_call.1']
  %s0 = inlined_call_operand.<no memory space> [shape: f32[1], index: 0, kind: input, shape index: {}]
  %s1 = inlined_call_operand.vmem [shape: f32[2,1024], index: 1, kind: input, shape index: {}]
  %s2 = inlined_call_operand.vmem [shape: f32[1024,20], index: 2, kind: input, shape index: {}]
  %s3 = inlined_call_operand.vmem [shape: f32[1,20], index: 3, kind: input, shape index: {}]
  %s4 = inlined_call_operand.hbm [shape: f32[2,10], index: 4, kind: output, shape index: {}]
  %s5 = sld [smem:[#allocation0]]
  $region26: #{tpu_custom_call.1} parent=0
    _
  %s7 = ssub.s32 1, %s5
  %s8 = scalar_select 0, %s7, %s5
  %9 = sst [smem:[#allocation2]] %s0
  $region1: #{tpu_custom_call.1} parent=0
    #allocation3 [shape = 'u8[4096]{0}', space=vmem, size = 0x1000, scoped, tag = 'output window, operand 0, single buffered']
    #allocation4 [shape = 's32[1]{0}', space=sflag, size = 0x4, scoped, tag = 'scoped memory for tpu_custom_call.1']
    %10 = vsyncpa [#allocation4], 0
    // Predicated region
    $region2: #{tpu_custom_call.1} parent=1 // pred_check
      _
    $region3: #{tpu_custom_call.1} parent=1 // pred_check_branch
      %12 = sbr.rel (0) target = $region5
    $region4: #{tpu_custom_call.1} parent=1 // pred_region
      _
    $region5: #{tpu_custom_call.1} parent=1 // pred_fallthru
      _
    // Predicated region
    $region6: #{tpu_custom_call.1} parent=1 // pred_check
      _
    $region7: #{tpu_custom_call.1} parent=1 // pred_check_branch
      %14 = sbr.rel (0) target = $region9
    $region8: #{tpu_custom_call.1} parent=1 // pred_region
      _
    $region9: #{tpu_custom_call.1} parent=1 // pred_fallthru
      _
    // Predicated region
    $region10: #{tpu_custom_call.1} parent=1 // pred_check
      _
    $region11: #{tpu_custom_call.1} parent=1 // pred_check_branch
      %16 = sbr.rel (0) target = $region13
    $region12: #{tpu_custom_call.1} parent=1 // pred_region
      _
    $region13: #{tpu_custom_call.1} parent=1 // pred_fallthru
      _
    // Predicated region
    $region14: #{tpu_custom_call.1} parent=1 // pred_check
      _
    $region15: #{tpu_custom_call.1} parent=1 // pred_check_branch
      %18 = sbr.rel (0) target = $region17
    $region16: #{tpu_custom_call.1} parent=1 // pred_region
      _
    $region17: #{tpu_custom_call.1} parent=1 // pred_fallthru
      _
    %v19 = vld [vmem:[%s1] sm:$0xff]
    %v20 = vld [vmem:[%s1 + $0x8] sm:$0xff]
    %v21 = vld [vmem:[%s1 + $0x10] sm:$0xff]
    %v22 = vld [vmem:[%s1 + $0x18] sm:$0xff]
    %v23 = vld [vmem:[%s1 + $0x20] sm:$0xff]
    %v24 = vld [vmem:[%s1 + $0x28] sm:$0xff]
    %v25 = vld [vmem:[%s1 + $0x30] sm:$0xff]
    %v26 = vld [vmem:[%s1 + $0x38] sm:$0xff]
    %v27 = vld [vmem:[%s2] sm:$0xff]
    %v28 = vld [vmem:[%s2 + $0x8] sm:$0xff]
    %v29 = vld [vmem:[%s2 + $0x10] sm:$0xff]
    %v30 = vld [vmem:[%s2 + $0x18] sm:$0xff]
    %v31 = vld [vmem:[%s2 + $0x20] sm:$0xff]
    %v32 = vld [vmem:[%s2 + $0x28] sm:$0xff]
    %v33 = vld [vmem:[%s2 + $0x30] sm:$0xff]
    %v34 = vld [vmem:[%s2 + $0x38] sm:$0xff]
    %v35 = vld [vmem:[%s2 + $0x40] sm:$0xff]
    %v36 = vld [vmem:[%s2 + $0x48] sm:$0xff]
    %v37 = vld [vmem:[%s2 + $0x50] sm:$0xff]
    %v38 = vld [vmem:[%s2 + $0x58] sm:$0xff]
    %v39 = vld [vmem:[%s2 + $0x60] sm:$0xff]
    %v40 = vld [vmem:[%s2 + $0x68] sm:$0xff]
    %v41 = vld [vmem:[%s2 + $0x70] sm:$0xff]
    %v42 = vld [vmem:[%s2 + $0x78] sm:$0xff]
    %v43 = vld [vmem:[%s2 + $0x80] sm:$0xff]
    %v44 = vld [vmem:[%s2 + $0x88] sm:$0xff]
    %v45 = vld [vmem:[%s2 + $0x90] sm:$0xff]
    %v46 = vld [vmem:[%s2 + $0x98] sm:$0xff]
    %v47 = vld [vmem:[%s2 + $0xa0] sm:$0xff]
    %v48 = vld [vmem:[%s2 + $0xa8] sm:$0xff]
    %v49 = vld [vmem:[%s2 + $0xb0] sm:$0xff]
    %v50 = vld [vmem:[%s2 + $0xb8] sm:$0xff]
    %v51 = vld [vmem:[%s2 + $0xc0] sm:$0xff]
    %v52 = vld [vmem:[%s2 + $0xc8] sm:$0xff]
    %v53 = vld [vmem:[%s2 + $0xd0] sm:$0xff]
    %v54 = vld [vmem:[%s2 + $0xd8] sm:$0xff]
    %v55 = vld [vmem:[%s2 + $0xe0] sm:$0xff]
    %v56 = vld [vmem:[%s2 + $0xe8] sm:$0xff]
    %v57 = vld [vmem:[%s2 + $0xf0] sm:$0xff]
    %v58 = vld [vmem:[%s2 + $0xf8] sm:$0xff]
    %v59 = vld [vmem:[%s2 + $0x100] sm:$0xff]
    %v60 = vld [vmem:[%s2 + $0x108] sm:$0xff]
    %v61 = vld [vmem:[%s2 + $0x110] sm:$0xff]
    %v62 = vld [vmem:[%s2 + $0x118] sm:$0xff]
    %v63 = vld [vmem:[%s2 + $0x120] sm:$0xff]
    %v64 = vld [vmem:[%s2 + $0x128] sm:$0xff]
    %v65 = vld [vmem:[%s2 + $0x130] sm:$0xff]
    %v66 = vld [vmem:[%s2 + $0x138] sm:$0xff]
    %v67 = vld [vmem:[%s2 + $0x140] sm:$0xff]
    %v68 = vld [vmem:[%s2 + $0x148] sm:$0xff]
    %v69 = vld [vmem:[%s2 + $0x150] sm:$0xff]
    %v70 = vld [vmem:[%s2 + $0x158] sm:$0xff]
    %v71 = vld [vmem:[%s2 + $0x160] sm:$0xff]
    %v72 = vld [vmem:[%s2 + $0x168] sm:$0xff]
    %v73 = vld [vmem:[%s2 + $0x170] sm:$0xff]
    %v74 = vld [vmem:[%s2 + $0x178] sm:$0xff]
    %v75 = vld [vmem:[%s2 + $0x180] sm:$0xff]
    %v76 = vld [vmem:[%s2 + $0x188] sm:$0xff]
    %v77 = vld [vmem:[%s2 + $0x190] sm:$0xff]
    %v78 = vld [vmem:[%s2 + $0x198] sm:$0xff]
    %v79 = vld [vmem:[%s2 + $0x1a0] sm:$0xff]
    %v80 = vld [vmem:[%s2 + $0x1a8] sm:$0xff]
    %v81 = vld [vmem:[%s2 + $0x1b0] sm:$0xff]
    %v82 = vld [vmem:[%s2 + $0x1b8] sm:$0xff]
    %v83 = vld [vmem:[%s2 + $0x1c0] sm:$0xff]
    %v84 = vld [vmem:[%s2 + $0x1c8] sm:$0xff]
    %v85 = vld [vmem:[%s2 + $0x1d0] sm:$0xff]
    %v86 = vld [vmem:[%s2 + $0x1d8] sm:$0xff]
    %v87 = vld [vmem:[%s2 + $0x1e0] sm:$0xff]
    %v88 = vld [vmem:[%s2 + $0x1e8] sm:$0xff]
    %v89 = vld [vmem:[%s2 + $0x1f0] sm:$0xff]
    %v90 = vld [vmem:[%s2 + $0x1f8] sm:$0xff]
    %v91 = vld [vmem:[%s2 + $0x200] sm:$0xff]
    %v92 = vld [vmem:[%s2 + $0x208] sm:$0xff]
    %v93 = vld [vmem:[%s2 + $0x210] sm:$0xff]
    %v94 = vld [vmem:[%s2 + $0x218] sm:$0xff]
    %v95 = vld [vmem:[%s2 + $0x220] sm:$0xff]
    %v96 = vld [vmem:[%s2 + $0x228] sm:$0xff]
    %v97 = vld [vmem:[%s2 + $0x230] sm:$0xff]
    %v98 = vld [vmem:[%s2 + $0x238] sm:$0xff]
    %v99 = vld [vmem:[%s2 + $0x240] sm:$0xff]
    %v100 = vld [vmem:[%s2 + $0x248] sm:$0xff]
    %v101 = vld [vmem:[%s2 + $0x250] sm:$0xff]
    %v102 = vld [vmem:[%s2 + $0x258] sm:$0xff]
    %v103 = vld [vmem:[%s2 + $0x260] sm:$0xff]
    %v104 = vld [vmem:[%s2 + $0x268] sm:$0xff]
    %v105 = vld [vmem:[%s2 + $0x270] sm:$0xff]
    %v106 = vld [vmem:[%s2 + $0x278] sm:$0xff]
    %v107 = vld [vmem:[%s2 + $0x280] sm:$0xff]
    %v108 = vld [vmem:[%s2 + $0x288] sm:$0xff]
    %v109 = vld [vmem:[%s2 + $0x290] sm:$0xff]
    %v110 = vld [vmem:[%s2 + $0x298] sm:$0xff]
    %v111 = vld [vmem:[%s2 + $0x2a0] sm:$0xff]
    %v112 = vld [vmem:[%s2 + $0x2a8] sm:$0xff]
    %v113 = vld [vmem:[%s2 + $0x2b0] sm:$0xff]
    %v114 = vld [vmem:[%s2 + $0x2b8] sm:$0xff]
    %v115 = vld [vmem:[%s2 + $0x2c0] sm:$0xff]
    %v116 = vld [vmem:[%s2 + $0x2c8] sm:$0xff]
    %v117 = vld [vmem:[%s2 + $0x2d0] sm:$0xff]
    %v118 = vld [vmem:[%s2 + $0x2d8] sm:$0xff]
    %v119 = vld [vmem:[%s2 + $0x2e0] sm:$0xff]
    %v120 = vld [vmem:[%s2 + $0x2e8] sm:$0xff]
    %v121 = vld [vmem:[%s2 + $0x2f0] sm:$0xff]
    %v122 = vld [vmem:[%s2 + $0x2f8] sm:$0xff]
    %v123 = vld [vmem:[%s2 + $0x300] sm:$0xff]
    %v124 = vld [vmem:[%s2 + $0x308] sm:$0xff]
    %v125 = vld [vmem:[%s2 + $0x310] sm:$0xff]
    %v126 = vld [vmem:[%s2 + $0x318] sm:$0xff]
    %v127 = vld [vmem:[%s2 + $0x320] sm:$0xff]
    %v128 = vld [vmem:[%s2 + $0x328] sm:$0xff]
    %v129 = vld [vmem:[%s2 + $0x330] sm:$0xff]
    %v130 = vld [vmem:[%s2 + $0x338] sm:$0xff]
    %v131 = vld [vmem:[%s2 + $0x340] sm:$0xff]
    %v132 = vld [vmem:[%s2 + $0x348] sm:$0xff]
    %v133 = vld [vmem:[%s2 + $0x350] sm:$0xff]
    %v134 = vld [vmem:[%s2 + $0x358] sm:$0xff]
    %v135 = vld [vmem:[%s2 + $0x360] sm:$0xff]
    %v136 = vld [vmem:[%s2 + $0x368] sm:$0xff]
    %v137 = vld [vmem:[%s2 + $0x370] sm:$0xff]
    %v138 = vld [vmem:[%s2 + $0x378] sm:$0xff]
    %v139 = vld [vmem:[%s2 + $0x380] sm:$0xff]
    %v140 = vld [vmem:[%s2 + $0x388] sm:$0xff]
    %v141 = vld [vmem:[%s2 + $0x390] sm:$0xff]
    %v142 = vld [vmem:[%s2 + $0x398] sm:$0xff]
    %v143 = vld [vmem:[%s2 + $0x3a0] sm:$0xff]
    %v144 = vld [vmem:[%s2 + $0x3a8] sm:$0xff]
    %v145 = vld [vmem:[%s2 + $0x3b0] sm:$0xff]
    %v146 = vld [vmem:[%s2 + $0x3b8] sm:$0xff]
    %v147 = vld [vmem:[%s2 + $0x3c0] sm:$0xff]
    %v148 = vld [vmem:[%s2 + $0x3c8] sm:$0xff]
    %v149 = vld [vmem:[%s2 + $0x3d0] sm:$0xff]
    %v150 = vld [vmem:[%s2 + $0x3d8] sm:$0xff]
    %v151 = vld [vmem:[%s2 + $0x3e0] sm:$0xff]
    %v152 = vld [vmem:[%s2 + $0x3e8] sm:$0xff]
    %v153 = vld [vmem:[%s2 + $0x3f0] sm:$0xff]
    %v154 = vld [vmem:[%s2 + $0x3f8] sm:$0xff]
    %v155 = vld [vmem:[%s3] sm:$0x1]
    %v157 = vperm.slane %v155, 0
    %167 = vst [vmem:[#allocation1] ss:$4 sm:$0xff] %v19
    %s168 = scalar_lea.vmem [#allocation1], 1
    %169 = vst [vmem:[%s168] ss:$4 sm:$0xff] %v21
    %s170 = scalar_lea.vmem [#allocation1], 2
    %171 = vst [vmem:[%s170] ss:$4 sm:$0xff] %v23
    %s172 = scalar_lea.vmem [#allocation1], 3
    %173 = vst [vmem:[%s172] ss:$4 sm:$0xff] %v25
    %s174 = scalar_lea.vmem [#allocation1], 32
    %175 = vst [vmem:[%s174] ss:$4 sm:$0xff] %v20
    %s176 = scalar_lea.vmem [#allocation1], 33
    %177 = vst [vmem:[%s176] ss:$4 sm:$0xff] %v22
    %s178 = scalar_lea.vmem [#allocation1], 34
    %179 = vst [vmem:[%s178] ss:$4 sm:$0xff] %v24
    %s180 = scalar_lea.vmem [#allocation1], 35
    %181 = vst [vmem:[%s180] ss:$4 sm:$0xff] %v26
    %v182 = vld.sshfl [vmem:[#allocation1] sm:$0xff pattern:$0x73625140]
    %v183 = vld.sshfl [vmem:[#allocation1 + $0x8] sm:$0xff pattern:$0x73625140]
    %v184 = vld.sshfl [vmem:[#allocation1 + $0x10] sm:$0xff pattern:$0x73625140]
    %v185 = vld.sshfl [vmem:[#allocation1 + $0x18] sm:$0xff pattern:$0x73625140]
    %v186 = vld.sshfl [vmem:[#allocation1 + $0x20] sm:$0xff pattern:$0x73625140]
    %v187 = vld.sshfl [vmem:[#allocation1 + $0x28] sm:$0xff pattern:$0x73625140]
    %v188 = vld.sshfl [vmem:[#allocation1 + $0x30] sm:$0xff pattern:$0x73625140]
    %v189 = vld.sshfl [vmem:[#allocation1 + $0x38] sm:$0xff pattern:$0x73625140]
    %198 = vmatpush.msra.mxu0 %v42
    %199 = vmatpush.msra.mxu0 %v41
    %200 = vmatpush.msra.mxu0 %v40
    %201 = vmatpush.msra.mxu0 %v39
    %202 = vmatpush.msra.mxu0 %v38
    %203 = vmatpush.msra.mxu0 %v37
    %204 = vmatpush.msra.mxu0 %v36
    %205 = vmatpush.msra.mxu0 %v35
    %206 = vmatpush.msra.mxu0 %v34
    %207 = vmatpush.msra.mxu0 %v33
    %208 = vmatpush.msra.mxu0 %v32
    %209 = vmatpush.msra.mxu0 %v31
    %210 = vmatpush.msra.mxu0 %v30
    %211 = vmatpush.msra.mxu0 %v29
    %212 = vmatpush.msra.mxu0 %v28
    %213 = vmatpush.msra.mxu0 %v27
    %214 = vmatmul.f32.gmra.mxu0 %v182
    %v215 = vpop.f32.mrf.mxu0
    %v216 = vadd.f32 %v157, %v215
    %217 = vdwg.mxu0
    %218 = vmatpush.msra.mxu0 %v58
    %219 = vmatpush.msra.mxu0 %v57
    %220 = vmatpush.msra.mxu0 %v56
    %221 = vmatpush.msra.mxu0 %v55
    %222 = vmatpush.msra.mxu0 %v54
    %223 = vmatpush.msra.mxu0 %v53
    %224 = vmatpush.msra.mxu0 %v52
    %225 = vmatpush.msra.mxu0 %v51
    %226 = vmatpush.msra.mxu0 %v50
    %227 = vmatpush.msra.mxu0 %v49
    %228 = vmatpush.msra.mxu0 %v48
    %229 = vmatpush.msra.mxu0 %v47
    %230 = vmatpush.msra.mxu0 %v46
    %231 = vmatpush.msra.mxu0 %v45
    %232 = vmatpush.msra.mxu0 %v44
    %233 = vmatpush.msra.mxu0 %v43
    %234 = vmatmul.f32.gmra.mxu0 %v183
    %v235 = vpop.f32.mrf.mxu0
    %v236 = vadd.f32 %v216, %v235
    %237 = vdwg.mxu0
    %238 = vmatpush.msra.mxu0 %v74
    %239 = vmatpush.msra.mxu0 %v73
    %240 = vmatpush.msra.mxu0 %v72
    %241 = vmatpush.msra.mxu0 %v71
    %242 = vmatpush.msra.mxu0 %v70
    %243 = vmatpush.msra.mxu0 %v69
    %244 = vmatpush.msra.mxu0 %v68
    %245 = vmatpush.msra.mxu0 %v67
    %246 = vmatpush.msra.mxu0 %v66
    %247 = vmatpush.msra.mxu0 %v65
    %248 = vmatpush.msra.mxu0 %v64
    %249 = vmatpush.msra.mxu0 %v63
    %250 = vmatpush.msra.mxu0 %v62
    %251 = vmatpush.msra.mxu0 %v61
    %252 = vmatpush.msra.mxu0 %v60
    %253 = vmatpush.msra.mxu0 %v59
    %254 = vmatmul.f32.gmra.mxu0 %v184
    %v255 = vpop.f32.mrf.mxu0
    %v256 = vadd.f32 %v236, %v255
    %257 = vdwg.mxu0
    %258 = vmatpush.msra.mxu0 %v90
    %259 = vmatpush.msra.mxu0 %v89
    %260 = vmatpush.msra.mxu0 %v88
    %261 = vmatpush.msra.mxu0 %v87
    %262 = vmatpush.msra.mxu0 %v86
    %263 = vmatpush.msra.mxu0 %v85
    %264 = vmatpush.msra.mxu0 %v84
    %265 = vmatpush.msra.mxu0 %v83
    %266 = vmatpush.msra.mxu0 %v82
    %267 = vmatpush.msra.mxu0 %v81
    %268 = vmatpush.msra.mxu0 %v80
    %269 = vmatpush.msra.mxu0 %v79
    %270 = vmatpush.msra.mxu0 %v78
    %271 = vmatpush.msra.mxu0 %v77
    %272 = vmatpush.msra.mxu0 %v76
    %273 = vmatpush.msra.mxu0 %v75
    %274 = vmatmul.f32.gmra.mxu0 %v185
    %v275 = vpop.f32.mrf.mxu0
    %v276 = vadd.f32 %v256, %v275
    %277 = vdwg.mxu0
    %278 = vmatpush.msra.mxu0 %v106
    %279 = vmatpush.msra.mxu0 %v105
    %280 = vmatpush.msra.mxu0 %v104
    %281 = vmatpush.msra.mxu0 %v103
    %282 = vmatpush.msra.mxu0 %v102
    %283 = vmatpush.msra.mxu0 %v101
    %284 = vmatpush.msra.mxu0 %v100
    %285 = vmatpush.msra.mxu0 %v99
    %286 = vmatpush.msra.mxu0 %v98
    %287 = vmatpush.msra.mxu0 %v97
    %288 = vmatpush.msra.mxu0 %v96
    %289 = vmatpush.msra.mxu0 %v95
    %290 = vmatpush.msra.mxu0 %v94
    %291 = vmatpush.msra.mxu0 %v93
    %292 = vmatpush.msra.mxu0 %v92
    %293 = vmatpush.msra.mxu0 %v91
    %294 = vmatmul.f32.gmra.mxu0 %v186
    %v295 = vpop.f32.mrf.mxu0
    %v296 = vadd.f32 %v276, %v295
    %297 = vdwg.mxu0
    %298 = vmatpush.msra.mxu0 %v122
    %299 = vmatpush.msra.mxu0 %v121
    %300 = vmatpush.msra.mxu0 %v120
    %301 = vmatpush.msra.mxu0 %v119
    %302 = vmatpush.msra.mxu0 %v118
    %303 = vmatpush.msra.mxu0 %v117
    %304 = vmatpush.msra.mxu0 %v116
    %305 = vmatpush.msra.mxu0 %v115
    %306 = vmatpush.msra.mxu0 %v114
    %307 = vmatpush.msra.mxu0 %v113
    %308 = vmatpush.msra.mxu0 %v112
    %309 = vmatpush.msra.mxu0 %v111
    %310 = vmatpush.msra.mxu0 %v110
    %311 = vmatpush.msra.mxu0 %v109
    %312 = vmatpush.msra.mxu0 %v108
    %313 = vmatpush.msra.mxu0 %v107
    %314 = vmatmul.f32.gmra.mxu0 %v187
    %v315 = vpop.f32.mrf.mxu0
    %v316 = vadd.f32 %v296, %v315
    %317 = vdwg.mxu0
    %318 = vmatpush.msra.mxu0 %v138
    %319 = vmatpush.msra.mxu0 %v137
    %320 = vmatpush.msra.mxu0 %v136
    %321 = vmatpush.msra.mxu0 %v135
    %322 = vmatpush.msra.mxu0 %v134
    %323 = vmatpush.msra.mxu0 %v133
    %324 = vmatpush.msra.mxu0 %v132
    %325 = vmatpush.msra.mxu0 %v131
    %326 = vmatpush.msra.mxu0 %v130
    %327 = vmatpush.msra.mxu0 %v129
    %328 = vmatpush.msra.mxu0 %v128
    %329 = vmatpush.msra.mxu0 %v127
    %330 = vmatpush.msra.mxu0 %v126
    %331 = vmatpush.msra.mxu0 %v125
    %332 = vmatpush.msra.mxu0 %v124
    %333 = vmatpush.msra.mxu0 %v123
    %334 = vmatmul.f32.gmra.mxu0 %v188
    %v335 = vpop.f32.mrf.mxu0
    %v336 = vadd.f32 %v316, %v335
    %337 = vdwg.mxu0
    %338 = vmatpush.msra.mxu0 %v154
    %339 = vmatpush.msra.mxu0 %v153
    %340 = vmatpush.msra.mxu0 %v152
    %341 = vmatpush.msra.mxu0 %v151
    %342 = vmatpush.msra.mxu0 %v150
    %343 = vmatpush.msra.mxu0 %v149
    %344 = vmatpush.msra.mxu0 %v148
    %345 = vmatpush.msra.mxu0 %v147
    %346 = vmatpush.msra.mxu0 %v146
    %347 = vmatpush.msra.mxu0 %v145
    %348 = vmatpush.msra.mxu0 %v144
    %349 = vmatpush.msra.mxu0 %v143
    %350 = vmatpush.msra.mxu0 %v142
    %351 = vmatpush.msra.mxu0 %v141
    %352 = vmatpush.msra.mxu0 %v140
    %353 = vmatpush.msra.mxu0 %v139
    %354 = vmatmul.f32.gmra.mxu0 %v189
    %v355 = vpop.f32.mrf.mxu0
    %v356 = vadd.f32 %v336, %v355
    %357 = vdwg.mxu0
    %v358 = vlaneseq
    %v359 = vand.u32 %v358, 127
    %vm360 = vcmp.lt.s32.totalorder %v359, 10
    %v361 = vsel %vm360, %v356, -inf
    %vm362 = vcmask 162816
    %v363 = vsel %vm362, %v361, -inf
    %364 = vmax.xlane.f32.xlu0 %v363
    %v365 = vpop.xlane.xlu0 %364
    %v366 = vsel %vm360, -inf, %v356
    %v367 = vsel %vm362, %v366, -inf
    %368 = vmax.xlane.f32.xlu0 %v367
    %v369 = vpop.xlane.xlu0 %368
    %v370 = vsel %vm360, %v365, %v369
    %v371 = vsub.f32 %v356, %v370
    %v372 = vmul.f32 %v371, 1.442695
    %v373 = vpow.pop %v372
    %v374 = vsel %vm360, %v373, 0.0
    %v375 = vsel %vm362, %v374, 0.0
    %376 = vadd.xlane.f32.xlu0 %v375
    %v377 = vpop.xlane.xlu0 %376
    %v378 = vsel %vm360, 0.0, %v373
    %v379 = vsel %vm362, %v378, 0.0
    %380 = vadd.xlane.f32.xlu0 %v379
    %v381 = vpop.xlane.xlu0 %380
    %v382 = vrcp.pop %v377
    %v383 = vmul.f32 %v377, %v382
    %v384 = vsub.f32 1.0, %v383
    %v385 = vmul.f32 %v382, %v384
    %v386 = vadd.f32 %v382, %v385
    %vm387 = vweird.f32 %v377
    %vm388 = vweird.f32 %v382
    %vm389 = vmor %vm387, %vm388
    %v390 = vsel %vm389, %v382, %v386
    %v391 = vand.u32 2147483647, %v377
    %vm392 = vcmp.eq.f32.partialorder %v391, 8.507059e+37
    %v393 = vand.u32 %v377, 2147483648
    %v394 = vor.u32 1.1754944e-38, %v393
    %v395 = vsel %vm392, %v394, %v390
    %v396 = vrcp.pop %v381
    %v397 = vmul.f32 %v381, %v396
    %v398 = vsub.f32 1.0, %v397
    %v399 = vmul.f32 %v396, %v398
    %v400 = vadd.f32 %v396, %v399
    %vm401 = vweird.f32 %v381
    %vm402 = vweird.f32 %v396
    %vm403 = vmor %vm401, %vm402
    %v404 = vsel %vm403, %v396, %v400
    %v405 = vand.u32 2147483647, %v381
    %vm406 = vcmp.eq.f32.partialorder %v405, 8.507059e+37
    %v407 = vand.u32 %v381, 2147483648
    %v408 = vor.u32 1.1754944e-38, %v407
    %v409 = vsel %vm406, %v408, %v404
    %s410 = sld [smem:[#allocation2]]
    %v411 = vstv %s410
    %vm412 = vcmp.gt.f32.partialorder %v395, %v411
    %v413 = vsel %vm360, %v395, %v409
    %v414 = vmul.f32 %v373, %v413
    %v415 = vsel %vm412, 1, 0
    %vm416 = vcmp.eq.s32.totalorder %v415, 1
    %418 = vrot.lane.b32.xlu0 %v414, 118
    %v419 = vpop.permute.xlu0 %418
    %v421 = vsel %vm416, %v414, %v419
    %vm422 = vcmask 80896
    %423 = vst.msk [vmem:[#allocation3] sm:$0xff] %vm422, %v421
    // Predicated region
    $region18: #{tpu_custom_call.1} parent=1 // pred_check
      _
    $region19: #{tpu_custom_call.1} parent=1 // pred_check_branch
      %425 = sbr.rel (0) target = $region21
    $region20: #{tpu_custom_call.1} parent=1 // pred_region
      %427 = vsyncadd [#allocation4], 96
      %s428 = sshll.u32 [#allocation3], 4
      %s429 = int_to_ptr.vmem [resolvable:$true] %s428
      %s430 = sshll.u32 %s4, 4
      %s431 = int_to_ptr.hbm [resolvable:$true] %s430
      %436 = dma.vmem_to_hbm [thread:$0]  %s429, 32, %s431, [#allocation4], 32, 32, 2
    $region21: #{tpu_custom_call.1} parent=1 // pred_fallthru
      _
    // Predicated region
    $region22: #{tpu_custom_call.1} parent=1 // pred_check
      _
    $region23: #{tpu_custom_call.1} parent=1 // pred_check_branch
      %438 = sbr.rel (0) target = $region25
    $region24: #{tpu_custom_call.1} parent=1 // pred_region
      %440 = dma.done [#allocation4], 128
    $region25: #{tpu_custom_call.1} parent=1 // pred_fallthru
      _
    %441 = vsyncpa [#allocation4], 1

</llo_original>
